<compile_context>
chip_gen: v7x
topology: tpu7x:2x2x1
jax: 0.10.0
libtpu: 0.0.40
codegen_flags: <defaults>
</compile_context>

<pallas_src>
import jax
import jax.numpy as jnp
from jax import lax
from jax.experimental import pallas as pl
from jax.experimental.pallas import tpu as pltpu
import numpy as np


def _round_up(x, m):
    return ((x + m - 1) // m) * m


def _length_regulator_kernel(cs_ref, ce_ref, x_ref, out_ref):
    # cs_ref, ce_ref: (1, 1, T) int32 exclusive / inclusive cumsum of durations
    # x_ref:          (1, T, Hp)
    # out_ref:        (1, TM, Hp)  -- one TM-row tile of the max_len axis
    T = x_ref.shape[1]
    TM = out_ref.shape[1]

    row0 = pl.program_id(1) * TM      # first global output-frame index of this tile
    cs = cs_ref[0]                    # (1, T) -- broadcasts over output rows
    ce = ce_ref[0]                    # (1, T)

    # Global output frame index m for each row of this tile, replicated over T.
    m_idx = lax.broadcasted_iota(jnp.int32, (TM, T), 0) + row0

    # One-hot expansion matrix in x's native dtype (values are exactly 0/1, so
    # bf16 is bit-exact for the selection and runs at native MXU speed).
    expand_mat = ((m_idx >= cs) & (m_idx < ce)).astype(x_ref.dtype)

    # Expansion == gather-by-matmul on the MXU, f32 accumulation.
    out_ref[0] = jnp.dot(expand_mat, x_ref[0],
                         preferred_element_type=jnp.float32).astype(out_ref.dtype)


def length_regulator(x, duration, max_len, *, tile_m=256):
    """FastSpeech LengthRegulator forward.

    x: [B, T, H] float, duration: [B, T] int, max_len: static int.
    Returns (out[B, max_len, H], mel_len[B] int32).
    """
    B, T, H = x.shape

    # Glue (plain JAX): clamp negatives (reference repeats max(d, 0) times),
    # exact int32 cumulative offsets.
    dur = jnp.maximum(duration, 0).astype(jnp.int32)
    ce = jnp.cumsum(dur, axis=1)            # inclusive cumsum
    cs = ce - dur                           # exclusive cumsum
    cs = cs.reshape(B, 1, T)
    ce = ce.reshape(B, 1, T)

    # Tiling / layout padding:
    #  - output time axis tiled into TM-row blocks (sublane multiple of 8),
    #  - hidden axis padded to a lane-dense multiple of 128 (unmasked stores).
    TM = min(tile_m, _round_up(max_len, 8))
    padded_len = _round_up(max_len, TM)
    Hp = _round_up(H, 128)
    x_p = x if Hp == H else jnp.pad(x, ((0, 0), (0, 0), (0, Hp - H)))

    grid = (B, padded_len // TM)

    flops = 2 * B * padded_len * T * Hp
    bytes_accessed = (x_p.size * x_p.dtype.itemsize
                      + B * padded_len * Hp * x.dtype.itemsize
                      + 2 * B * T * 4)

    out = pl.pallas_call(
        _length_regulator_kernel,
        out_shape=jax.ShapeDtypeStruct((B, padded_len, Hp), x.dtype),
        grid_spec=pltpu.PrefetchScalarGridSpec(
            num_scalar_prefetch=0,
            grid=grid,
            in_specs=[
                # cs / ce / x stay VMEM-resident across the inner (time-tile) axis.
                pl.BlockSpec((1, 1, T), lambda b, j: (b, 0, 0)),
                pl.BlockSpec((1, 1, T), lambda b, j: (b, 0, 0)),
                pl.BlockSpec((1, T, Hp), lambda b, j: (b, 0, 0)),
            ],
            out_specs=pl.BlockSpec((1, TM, Hp), lambda b, j: (b, j, 0)),
        ),
        compiler_params=pltpu.CompilerParams(
            dimension_semantics=("parallel", "parallel"),
            vmem_limit_bytes=64 * 1024 * 1024),
        cost_estimate=pl.CostEstimate(flops=flops, transcendentals=0,
                                      bytes_accessed=bytes_accessed),
    )(cs, ce, x_p)

    # Strip layout padding.
    out = out[:, :max_len, :H]
    mel_len = jnp.sum(dur, axis=1).astype(jnp.int32)
    return out, mel_len


def _numpy_reference(x, duration, max_len):
    x = np.asarray(x)
    duration = np.asarray(duration)
    B, T, H = x.shape
    out = np.zeros((B, max_len, H), dtype=x.dtype)
    mel_len = np.zeros((B,), dtype=np.int32)
    for b in range(B):
        pos = 0
        for t in range(T):
            d = max(int(duration[b, t]), 0)
            for _ in range(d):
                if pos < max_len:
                    out[b, pos] = x[b, t]
                pos += 1
        mel_len[b] = pos
    return out, mel_len


if __name__ == "__main__":
    key = jax.random.PRNGKey(0)
    kx, kd = jax.random.split(key)

    B, T, H = 2, 8, 32
    max_len = 32

    x = jax.random.normal(kx, (B, T, H), dtype=jnp.float32)
    # durations in [0, 3] so total length always fits in max_len (<= 24)
    duration = jax.random.randint(kd, (B, T), 0, 4, dtype=jnp.int32)

    out, mel_len = length_regulator(x, duration, max_len)
    out = jax.block_until_ready(out)
    mel_len = jax.block_until_ready(mel_len)

    ref_out, ref_len = _numpy_reference(x, duration, max_len)
    np.testing.assert_allclose(np.asarray(out), ref_out, rtol=1e-6, atol=1e-6)
    np.testing.assert_array_equal(np.asarray(mel_len), ref_len)

    print("KERNEL_OK")
</pallas_src>

<mosaic_0001>
module attributes {stable_mosaic.version = 11 : i64} {
  func.func @_length_regulator_kernel(%arg0: i32, %arg1: i32, %arg2: memref<1x1x8xi32, #tpu.memory_space<vmem>>, %arg3: memref<1x1x8xi32, #tpu.memory_space<vmem>>, %arg4: memref<1x8x128xf32, #tpu.memory_space<vmem>>, %arg5: memref<1x32x128xf32, #tpu.memory_space<vmem>>) attributes {dimension_semantics = [#tpu.dimension_semantics<parallel>, #tpu.dimension_semantics<parallel>], iteration_bounds = array<i64: 2, 1>, scalar_prefetch = 0 : i64, scratch_operands = 0 : i64, tpu.core_type = #tpu.core_type<tc>, window_params = [{transform_indices = @transform_0, window_bounds = array<i64: 1, 1, 8>}, {transform_indices = @transform_1, window_bounds = array<i64: 1, 1, 8>}, {transform_indices = @transform_2, window_bounds = array<i64: 1, 8, 128>}, {transform_indices = @transform_3, window_bounds = array<i64: 1, 32, 128>}]} {
    %c32_i32 = arith.constant 32 : i32
    %0 = arith.muli %arg1, %c32_i32 : i32
    %c0 = arith.constant 0 : index
    %c0_0 = arith.constant 0 : index
    %c0_1 = arith.constant 0 : index
    %1 = vector.load %arg2[%c0, %c0_0, %c0_1] : memref<1x1x8xi32, #tpu.memory_space<vmem>>, vector<1x1x8xi32>
    %2 = vector.shape_cast %1 : vector<1x1x8xi32> to vector<1x8xi32>
    %c0_2 = arith.constant 0 : index
    %c0_3 = arith.constant 0 : index
    %c0_4 = arith.constant 0 : index
    %3 = vector.load %arg3[%c0_2, %c0_3, %c0_4] : memref<1x1x8xi32, #tpu.memory_space<vmem>>, vector<1x1x8xi32>
    %4 = vector.shape_cast %3 : vector<1x1x8xi32> to vector<1x8xi32>
    %5 = tpu.iota {dimensions = array<i32: 0>} : vector<32x8xi32>
    %6 = vector.broadcast %0 : i32 to vector<32x8xi32>
    %7 = arith.addi %5, %6 : vector<32x8xi32>
    %8 = vector.broadcast %2 : vector<1x8xi32> to vector<32x8xi32>
    %9 = arith.cmpi sge, %7, %8 : vector<32x8xi32>
    %10 = vector.broadcast %4 : vector<1x8xi32> to vector<32x8xi32>
    %11 = arith.cmpi slt, %7, %10 : vector<32x8xi32>
    %12 = arith.andi %9, %11 : vector<32x8xi1>
    %13 = arith.extui %12 : vector<32x8xi1> to vector<32x8xi32>
    %14 = arith.sitofp %13 : vector<32x8xi32> to vector<32x8xf32>
    %c0_5 = arith.constant 0 : index
    %c0_6 = arith.constant 0 : index
    %c0_7 = arith.constant 0 : index
    %15 = vector.load %arg4[%c0_5, %c0_6, %c0_7] : memref<1x8x128xf32, #tpu.memory_space<vmem>>, vector<1x8x128xf32>
    %16 = vector.shape_cast %15 : vector<1x8x128xf32> to vector<8x128xf32>
    %cst = arith.constant dense<0.000000e+00> : vector<32x128xf32>
    %17 = tpu.matmul %14, %16, %cst {dimension_numbers = #tpu.dot_dimension_numbers<[1], [0], [0], [1], [0, 0, 1, 1], [], []>} : vector<32x8xf32>, vector<8x128xf32>, vector<32x128xf32> -> vector<32x128xf32>
    %c0_8 = arith.constant 0 : index
    %c0_9 = arith.constant 0 : index
    %c0_10 = arith.constant 0 : index
    %18 = vector.load %arg5[%c0_8, %c0_9, %c0_10] : memref<1x32x128xf32, #tpu.memory_space<vmem>>, vector<1x32x128xf32>
    %19 = vector.shape_cast %18 : vector<1x32x128xf32> to vector<32x128xf32>
    %20 = vector.shape_cast %17 : vector<32x128xf32> to vector<1x32x128xf32>
    tpu.vector_store %arg5[%c0_8, %c0_9, %c0_10], %20 {strides = array<i32>} : memref<1x32x128xf32, #tpu.memory_space<vmem>>, vector<1x32x128xf32>,
    return
  }
  func.func @transform_0(%arg0: i32, %arg1: i32) -> (i32, i32, i32) {
    %c0_i32 = arith.constant 0 : i32
    %c0_i32_0 = arith.constant 0 : i32
    %c0_i32_1 = arith.constant 0 : i32
    return %arg0, %c0_i32, %c0_i32_0 : i32, i32, i32
  }
  func.func @transform_1(%arg0: i32, %arg1: i32) -> (i32, i32, i32) {
    %c0_i32 = arith.constant 0 : i32
    %c0_i32_0 = arith.constant 0 : i32
    %c0_i32_1 = arith.constant 0 : i32
    return %arg0, %c0_i32, %c0_i32_0 : i32, i32, i32
  }
  func.func @transform_2(%arg0: i32, %arg1: i32) -> (i32, i32, i32) {
    %c0_i32 = arith.constant 0 : i32
    %c0_i32_0 = arith.constant 0 : i32
    %c0_i32_1 = arith.constant 0 : i32
    return %arg0, %c0_i32, %c0_i32_0 : i32, i32, i32
  }
  func.func @transform_3(%arg0: i32, %arg1: i32) -> (i32, i32, i32) {
    %c0_i32 = arith.constant 0 : i32
    %c0_i32_0 = arith.constant 0 : i32
    return %arg0, %arg1, %c0_i32 : i32, i32, i32
  }
}

</mosaic_0001>

<llo_original>
// kernel: tpu_custom_call.1
$region0: #{tpu_custom_call.1}
  #allocation0 [shape = 'u32[]', space=smem, size = 0x4, offset = 0x4, fixed_abs, tag = 'smem constant byte address 0x4 - core index']
  #allocation1 [shape = 'u32[144,128]{1,0:T(1,128)}', space=vmem, size = 0x12000, scoped, tag = 'internal scratch']
  %s0 = inlined_call_operand.hbm [shape: s32[2,1,8], index: 0, kind: input, shape index: {}]
  %s1 = inlined_call_operand.hbm [shape: s32[2,1,8], index: 1, kind: input, shape index: {}]
  %s2 = inlined_call_operand.hbm [shape: f32[2,8,128], index: 2, kind: input, shape index: {}]
  %s3 = inlined_call_operand.hbm [shape: f32[2,32,128], index: 3, kind: output, shape index: {}]
  %s4 = sld [smem:[#allocation0]]
  $region57: #{tpu_custom_call.1} parent=0
    _
  %s6 = ssub.s32 1, %s4
  %s7 = scalar_select 0, %s6, %s4
  $region1: #{tpu_custom_call.1} parent=0
    #allocation2 [shape = 'u8[1024]{0}', space=vmem, size = 0x400, scoped, tag = 'input window, operand 0']
    #allocation3 [shape = 's32[2]{0}', space=sflag, size = 0x8, scoped, tag = 'scoped memory for tpu_custom_call.1']
    #allocation4 [shape = 's32[2]{0}', space=sflag, size = 0x8, scoped, tag = 'scoped memory for tpu_custom_call.1']
    #allocation5 [shape = 'u8[1024]{0}', space=vmem, size = 0x400, scoped, tag = 'input window, operand 1']
    #allocation6 [shape = 's32[2]{0}', space=sflag, size = 0x8, scoped, tag = 'scoped memory for tpu_custom_call.1']
    #allocation7 [shape = 'u8[8192]{0}', space=vmem, size = 0x2000, scoped, tag = 'input window, operand 2']
    #allocation8 [shape = 'u8[32768]{0}', space=vmem, size = 0x8000, scoped, tag = 'output window, operand 0']
    %8 = vsyncpa [#allocation3], 0
    %s9 = scalar_lea.sflag [#allocation3], 1
    %10 = vsyncpa %s9, 0
    %11 = vsyncpa [#allocation6], 0
    %s12 = scalar_lea.sflag [#allocation6], 1
    %13 = vsyncpa %s12, 0
    %14 = vsyncpa [#allocation4], 0
    %s15 = scalar_lea.sflag [#allocation4], 1
    %16 = vsyncpa %s15, 0
    loop: start=0, step=1, limit=4
    $region2: #{tpu_custom_call.1} parent=1 // loop_pre_header
      _
    $region3: #{tpu_custom_call.1} parent=1 // loop_header
      %s18 = sphi 0, %s22
      %p19 = scmp.ge.s32.totalorder %s18, 4
      %s25 = sphi 0, %s37
      %s26 = sphi 0, %s33
      %s27 = sphi 0, %s25
      %s28 = sphi 0, %s26
      %s29 = sphi 0, %s27
      %s30 = sphi 0, %s28
      %s40 = sphi 0, %s42
      %s43 = sphi 0, %s40
      %s44 = sphi 0, %s43
      %s60 = sphi 0, %s44
      %s66 = sphi 0, %s68
      %s69 = sphi 0, %s66
      %s70 = sphi 0, %s69
      %s86 = sphi 0, %s70
      %s92 = sphi 0, %s94
      %s95 = sphi 0, %s92
      %s96 = sphi 0, %s95
      %s112 = sphi 0, %s96
      %s120 = sphi 0, %s122
      %s123 = sphi 0, %s120
      %s124 = sphi 0, %s123
      %s140 = sphi 0, %s124
    $region4: #{tpu_custom_call.1} parent=1 // loop_header_branch
      %21 = sbr.rel (%p19) target = $region8
    $region5: #{tpu_custom_call.1} parent=1 // loop_body
      %s23 = ssub.s32 %s18, 1
      %s24 = ssub.s32 %s18, 2
      %s31 = sadd.s32 1, %s26
      %p32 = scmp.ge.s32.totalorder %s31, 1
      %s33 = scalar_select %p32, 0, %s31
      %s34 = sadd.s32 1, %s25
      %s35 = scalar_select %p32, %s34, %s25
      %p36 = scmp.ge.s32.totalorder %s35, 2
      %s37 = scalar_select %p36, 0, %s35
      %s38 = ssub.s32 %s25, %s37
      %p39 = scmp.eq.s32.totalorder %s38, 0
      %s41 = sadd.s32 %s40, 1
      %s42 = scalar_select %p39, %s40, %s41
      %p45 = pneg %p39
      %p46 = scmp.eq.s32.totalorder %s18, 1
      %p47 = por %p45, %p46
      %p48 = scmp.ne.s32.totalorder %s40, %s43
      %p49 = scmp.eq.s32.totalorder %s18, 0
      %p50 = por %p48, %p49
      %p51 = scmp.ne.s32.totalorder %s40, %s43
      %p52 = scmp.eq.s32.totalorder %s23, 1
      %p53 = por %p51, %p52
      %p54 = scmp.ne.s32.totalorder %s43, %s44
      %p55 = scmp.eq.s32.totalorder %s23, 0
      %p56 = por %p54, %p55
      %p57 = scmp.ne.s32.totalorder %s43, %s44
      %p58 = scmp.eq.s32.totalorder %s24, 1
      %p59 = por %p57, %p58
      %p61 = scmp.ne.s32.totalorder %s44, %s60
      %p62 = scmp.eq.s32.totalorder %s24, 0
      %p63 = por %p61, %p62
      %s64 = ssub.s32 %s25, %s37
      %p65 = scmp.eq.s32.totalorder %s64, 0
      %s67 = sadd.s32 %s66, 1
      %s68 = scalar_select %p65, %s66, %s67
      %p71 = pneg %p65
      %p72 = scmp.eq.s32.totalorder %s18, 1
      %p73 = por %p71, %p72
      %p74 = scmp.ne.s32.totalorder %s66, %s69
      %p75 = scmp.eq.s32.totalorder %s18, 0
      %p76 = por %p74, %p75
      %p77 = scmp.ne.s32.totalorder %s66, %s69
      %p78 = scmp.eq.s32.totalorder %s23, 1
      %p79 = por %p77, %p78
      %p80 = scmp.ne.s32.totalorder %s69, %s70
      %p81 = scmp.eq.s32.totalorder %s23, 0
      %p82 = por %p80, %p81
      %p83 = scmp.ne.s32.totalorder %s69, %s70
      %p84 = scmp.eq.s32.totalorder %s24, 1
      %p85 = por %p83, %p84
      %p87 = scmp.ne.s32.totalorder %s70, %s86
      %p88 = scmp.eq.s32.totalorder %s24, 0
      %p89 = por %p87, %p88
      %s90 = ssub.s32 %s25, %s37
      %p91 = scmp.eq.s32.totalorder %s90, 0
      %s93 = sadd.s32 %s92, 1
      %s94 = scalar_select %p91, %s92, %s93
      %p97 = pneg %p91
      %p98 = scmp.eq.s32.totalorder %s18, 1
      %p99 = por %p97, %p98
      %p100 = scmp.ne.s32.totalorder %s92, %s95
      %p101 = scmp.eq.s32.totalorder %s18, 0
      %p102 = por %p100, %p101
      %p103 = scmp.ne.s32.totalorder %s92, %s95
      %p104 = scmp.eq.s32.totalorder %s23, 1
      %p105 = por %p103, %p104
      %p106 = scmp.ne.s32.totalorder %s95, %s96
      %p107 = scmp.eq.s32.totalorder %s23, 0
      %p108 = por %p106, %p107
      %p109 = scmp.ne.s32.totalorder %s95, %s96
      %p110 = scmp.eq.s32.totalorder %s24, 1
      %p111 = por %p109, %p110
      %p113 = scmp.ne.s32.totalorder %s96, %s112
      %p114 = scmp.eq.s32.totalorder %s24, 0
      %p115 = por %p113, %p114
      %s116 = ssub.s32 %s25, %s37
      %s117 = ssub.s32 %s26, %s33
      %s118 = sor.u32 %s116, %s117
      %p119 = scmp.eq.s32.totalorder %s118, 0
      %s121 = sadd.s32 %s120, 1
      %s122 = scalar_select %p119, %s120, %s121
      %p125 = pneg %p119
      %p126 = scmp.eq.s32.totalorder %s18, 1
      %p127 = por %p125, %p126
      %p128 = scmp.ne.s32.totalorder %s120, %s123
      %p129 = scmp.eq.s32.totalorder %s18, 0
      %p130 = por %p128, %p129
      %p131 = scmp.ne.s32.totalorder %s120, %s123
      %p132 = scmp.eq.s32.totalorder %s23, 1
      %p133 = por %p131, %p132
      %p134 = scmp.ne.s32.totalorder %s123, %s124
      %p135 = scmp.eq.s32.totalorder %s23, 0
      %p136 = por %p134, %p135
      %p137 = scmp.ne.s32.totalorder %s123, %s124
      %p138 = scmp.eq.s32.totalorder %s24, 1
      %p139 = por %p137, %p138
      %p141 = scmp.ne.s32.totalorder %s124, %s140
      %p142 = scmp.eq.s32.totalorder %s24, 0
      %p143 = por %p141, %p142
      %p144 = scmp.le.s32.totalorder 1, %s18
      %p145 = scmp.lt.s32.totalorder %s18, 3
      %p146 = pnand %p144, %p145
      %p147 = pneg %p146
      // Predicated region
      $region9: #{tpu_custom_call.1} parent=5 // pred_check
        _
      $region10: #{tpu_custom_call.1} parent=5 // pred_check_branch
        %149 = sbr.rel (%p146) target = $region12
      $region11: #{tpu_custom_call.1} parent=5 // pred_region
        %s150 = ssub.s32 %s18, 1
      $region12: #{tpu_custom_call.1} parent=5 // pred_fallthru
        _
      %p151 = scmp.lt.s32.totalorder %s18, 2
      // Predicated region
      $region13: #{tpu_custom_call.1} parent=5 // pred_check
        %p152 = pneg %p151
      $region14: #{tpu_custom_call.1} parent=5 // pred_check_branch
        %154 = sbr.rel (%p152) target = $region16
      $region15: #{tpu_custom_call.1} parent=5 // pred_region
        // Predicated region
        $region17: #{tpu_custom_call.1} parent=15 // pred_check
          %p155 = pneg %p50
        $region18: #{tpu_custom_call.1} parent=15 // pred_check_branch
          %157 = sbr.rel (%p155) target = $region20
        $region19: #{tpu_custom_call.1} parent=15 // pred_region
          %s158 = sand.u32 %s40, 1
          %s159 = scalar_lea.sflag [#allocation3], %s158
          %s160 = sand.u32 %s40, 1
          %s161 = scalar_lea.vmem [#allocation2], %s160
          %s163 = ssub.s32 16, 16
          %164 = vsyncadd %s159, %s163
          %s165 = smul.addr %s25, 16
          %s166 = scalar_lea.hbm %s0, %s165
          %s168 = sshll.u32 %s161, 4
          %s169 = int_to_ptr.vmem [resolvable:$true] %s168
          %171 = dma.hbm_to_vmem [thread:$0]  %s166, 16, %s169, %s159
        $region20: #{tpu_custom_call.1} parent=15 // pred_fallthru
          _
        // Predicated region
        $region21: #{tpu_custom_call.1} parent=15 // pred_check
          %p172 = pneg %p76
        $region22: #{tpu_custom_call.1} parent=15 // pred_check_branch
          %174 = sbr.rel (%p172) target = $region24
        $region23: #{tpu_custom_call.1} parent=15 // pred_region
          %s175 = sand.u32 %s18, 1
          %s176 = scalar_lea.sflag [#allocation6], %s175
          %s177 = sand.u32 %s66, 1
          %s178 = scalar_lea.vmem [#allocation5], %s177
          %s180 = ssub.s32 16, 16
          %181 = vsyncadd %s176, %s180
          %s182 = smul.addr %s25, 16
          %s183 = scalar_lea.hbm %s1, %s182
          %s185 = sshll.u32 %s178, 4
          %s186 = int_to_ptr.vmem [resolvable:$true] %s185
          %188 = dma.hbm_to_vmem [thread:$0]  %s183, 16, %s186, %s176
        $region24: #{tpu_custom_call.1} parent=15 // pred_fallthru
          _
        // Predicated region
        $region25: #{tpu_custom_call.1} parent=15 // pred_check
          %p189 = pneg %p102
        $region26: #{tpu_custom_call.1} parent=15 // pred_check_branch
          %191 = sbr.rel (%p189) target = $region28
        $region27: #{tpu_custom_call.1} parent=15 // pred_region
          %s192 = sand.u32 %s18, 1
          %s193 = scalar_lea.sflag [#allocation6], %s192
          %s194 = sand.u32 %s92, 1
          %s195 = smul.addr %s194, 8
          %s196 = scalar_lea.vmem [#allocation7], %s195
          %s198 = ssub.s32 128, 128
          %199 = vsyncadd %s193, %s198
          %s200 = smul.addr %s25, 128
          %s201 = scalar_lea.hbm %s2, %s200
          %s203 = sshll.u32 %s196, 4
          %s204 = int_to_ptr.vmem [resolvable:$true] %s203
          %206 = dma.hbm_to_vmem [thread:$0]  %s201, 128, %s204, %s193
        $region28: #{tpu_custom_call.1} parent=15 // pred_fallthru
          _
      $region16: #{tpu_custom_call.1} parent=5 // pred_fallthru
        _
      %p207 = scmp.le.s32.totalorder 1, %s18
      %p208 = scmp.lt.s32.totalorder %s18, 3
      %p209 = pnand %p207, %p208
      %p210 = pneg %p209
      // Predicated region
      $region29: #{tpu_custom_call.1} parent=5 // pred_check
        _
      $region30: #{tpu_custom_call.1} parent=5 // pred_check_branch
        %212 = sbr.rel (%p209) target = $region32
      $region31: #{tpu_custom_call.1} parent=5 // pred_region
        %s213 = ssub.s32 %s18, 1
        %s214 = sand.u32 %s43, 1
        %s215 = scalar_lea.sflag [#allocation3], %s214
        %s216 = sand.u32 %s43, 1
        %s217 = scalar_lea.vmem [#allocation2], %s216
        // Predicated region
        $region33: #{tpu_custom_call.1} parent=31 // pred_check
          %p218 = pneg %p56
        $region34: #{tpu_custom_call.1} parent=31 // pred_check_branch
          %220 = sbr.rel (%p218) target = $region36
        $region35: #{tpu_custom_call.1} parent=31 // pred_region
          %221 = dma.done %s215, 16
        $region36: #{tpu_custom_call.1} parent=31 // pred_fallthru
          _
        %s222 = sand.u32 %s23, 1
        %s223 = scalar_lea.sflag [#allocation6], %s222
        %s224 = sand.u32 %s69, 1
        %s225 = scalar_lea.vmem [#allocation5], %s224
        // Predicated region
        $region37: #{tpu_custom_call.1} parent=31 // pred_check
          %p226 = pneg %p82
        $region38: #{tpu_custom_call.1} parent=31 // pred_check_branch
          %228 = sbr.rel (%p226) target = $region40
        $region39: #{tpu_custom_call.1} parent=31 // pred_region
          %229 = dma.done %s223, 16
        $region40: #{tpu_custom_call.1} parent=31 // pred_fallthru
          _
        %s230 = sand.u32 %s23, 1
        %s231 = scalar_lea.sflag [#allocation6], %s230
        %s232 = sand.u32 %s95, 1
        %s233 = smul.addr %s232, 8
        %s234 = scalar_lea.vmem [#allocation7], %s233
        // Predicated region
        $region41: #{tpu_custom_call.1} parent=31 // pred_check
          %p235 = pneg %p108
        $region42: #{tpu_custom_call.1} parent=31 // pred_check_branch
          %237 = sbr.rel (%p235) target = $region44
        $region43: #{tpu_custom_call.1} parent=31 // pred_region
          %238 = dma.done %s231, 128
        $region44: #{tpu_custom_call.1} parent=31 // pred_fallthru
          _
        %s239 = sand.u32 %s43, 1
        %s240 = scalar_lea.sflag [#allocation3], %s239
        %s241 = sand.u32 %s43, 1
        %s242 = scalar_lea.vmem [#allocation2], %s241
        %p243 = pneg %p56
        %p244 = pneg %p53
        %s245 = sand.u32 %s23, 1
        %s246 = scalar_lea.sflag [#allocation6], %s245
        %s247 = sand.u32 %s69, 1
        %s248 = scalar_lea.vmem [#allocation5], %s247
        %p249 = pneg %p82
        %p250 = pneg %p79
        %s251 = sand.u32 %s23, 1
        %s252 = scalar_lea.sflag [#allocation6], %s251
        %s253 = sand.u32 %s95, 1
        %s254 = smul.addr %s253, 8
        %s255 = scalar_lea.vmem [#allocation7], %s254
        %p256 = pneg %p108
        %p257 = pneg %p105
        %p258 = pneg %p136
        %p259 = pneg %p133
        %s260 = sand.u32 %s123, 1
        %s261 = scalar_lea.sflag [#allocation4], %s260
        %s262 = sand.u32 %s123, 1
        %s263 = smul.addr %s262, 32
        %s264 = scalar_lea.vmem [#allocation8], %s263
        %s265 = smul.u32 4, %s28
        %s266 = smul.u32 %s28, 32
        %v267 = vld [vmem:[%s217] sm:$0x1]
        %v268 = vld [vmem:[%s225] sm:$0x1]
        %v269 = vlaneseq
        %v270 = vshrl.u32 %v269, 7
        %v271 = vadd.s32 %v270, 8
        %v272 = vadd.s32 %v270, 16
        %v273 = vadd.s32 %v270, 24
        %v274 = vstv %s266
        %v275 = vadd.s32 %v270, %v274
        %v276 = vadd.s32 %v271, %v274
        %v277 = vadd.s32 %v272, %v274
        %v278 = vadd.s32 %v273, %v274
        %v279 = vlaneseq
        %v280 = vshrl.u32 %v279, 7
        %v281 = vsub.s32 0, %v280
        %v282 = vrot.slane %v267, %v281
        %vm283 = vcmp.ge.s32.totalorder %v275, %v282
        %vm284 = vcmp.ge.s32.totalorder %v276, %v282
        %vm285 = vcmp.ge.s32.totalorder %v277, %v282
        %vm286 = vcmp.ge.s32.totalorder %v278, %v282
        %v287 = vlaneseq
        %v288 = vshrl.u32 %v287, 7
        %v289 = vsub.s32 0, %v288
        %v290 = vrot.slane %v268, %v289
        %vm291 = vcmp.lt.s32.totalorder %v275, %v290
        %vm292 = vcmp.lt.s32.totalorder %v276, %v290
        %vm293 = vcmp.lt.s32.totalorder %v277, %v290
        %vm294 = vcmp.lt.s32.totalorder %v278, %v290
        %vm295 = vmand %vm283, %vm291
        %vm296 = vmand %vm284, %vm292
        %vm297 = vmand %vm285, %vm293
        %vm298 = vmand %vm286, %vm294
        %v299 = vsel %vm295, 1, 0
        %v300 = vsel %vm296, 1, 0
        %v301 = vsel %vm297, 1, 0
        %v302 = vsel %vm298, 1, 0
        %v303 = vcvt.s32.f32 %v299
        %v304 = vcvt.s32.f32 %v300
        %v305 = vcvt.s32.f32 %v301
        %v306 = vcvt.s32.f32 %v302
        %v307 = vld [vmem:[%s234] sm:$0xff]
        %vm308 = vcmask 64512
        %v310 = vsel %vm308, %v303, 0
        %v313 = vsel %vm308, %v304, 0
        %v316 = vsel %vm308, %v305, 0
        %v319 = vsel %vm308, %v306, 0
        %321 = vmatprep.subr.mxu0 0.0
        %322 = vmatpush1.msra.mxu0 %v307
        %323 = vmatprep.subr.mxu0 0.0
        %324 = vmatpush1.msra.mxu0 0.0
        %325 = vmatprep.subr.mxu0 0.0
        %326 = vmatpush1.msra.mxu0 0.0
        %327 = vmatprep.subr.mxu0 0.0
        %328 = vmatpush1.msra.mxu0 0.0
        %329 = vmatprep.subr.mxu0 0.0
        %330 = vmatpush1.msra.mxu0 0.0
        %331 = vmatprep.subr.mxu0 0.0
        %332 = vmatpush1.msra.mxu0 0.0
        %333 = vmatprep.subr.mxu0 0.0
        %334 = vmatpush1.msra.mxu0 0.0
        %335 = vmatprep.subr.mxu0 0.0
        %336 = vmatpush1.msra.mxu0 0.0
        %337 = vmatprep.subr.mxu0 0.0
        %338 = vmatpush1.msra.mxu0 0.0
        %339 = vmatprep.subr.mxu0 0.0
        %340 = vmatpush1.msra.mxu0 0.0
        %341 = vmatprep.subr.mxu0 0.0
        %342 = vmatpush1.msra.mxu0 0.0
        %343 = vmatprep.subr.mxu0 0.0
        %344 = vmatpush1.msra.mxu0 0.0
        %345 = vmatprep.subr.mxu0 0.0
        %346 = vmatpush1.msra.mxu0 0.0
        %347 = vmatprep.subr.mxu0 0.0
        %348 = vmatpush1.msra.mxu0 0.0
        %349 = vmatprep.subr.mxu0 0.0
        %350 = vmatpush1.msra.mxu0 0.0
        %351 = vmatprep.subr.mxu0 0.0
        %352 = vmatpush1.msra.mxu0 0.0
        %353 = vmatprep.subr.mxu0 0.0
        %354 = vmatpush1.msra.mxu0 0.0
        %355 = vmatprep.subr.mxu0 0.0
        %356 = vmatpush1.msra.mxu0 0.0
        %357 = vmatprep.subr.mxu0 0.0
        %358 = vmatpush1.msra.mxu0 0.0
        %359 = vmatprep.subr.mxu0 0.0
        %360 = vmatpush1.msra.mxu0 0.0
        %361 = vmatprep.subr.mxu0 0.0
        %362 = vmatpush1.msra.mxu0 0.0
        %363 = vmatprep.subr.mxu0 0.0
        %364 = vmatpush1.msra.mxu0 0.0
        %365 = vmatprep.subr.mxu0 0.0
        %366 = vmatpush1.msra.mxu0 0.0
        %367 = vmatprep.subr.mxu0 0.0
        %368 = vmatpush1.msra.mxu0 0.0
        %369 = vmatprep.subr.mxu0 0.0
        %370 = vmatpush1.msra.mxu0 0.0
        %371 = vmatprep.subr.mxu0 0.0
        %372 = vmatpush1.msra.mxu0 0.0
        %373 = vmatprep.subr.mxu0 0.0
        %374 = vmatpush1.msra.mxu0 0.0
        %375 = vmatprep.subr.mxu0 0.0
        %376 = vmatpush1.msra.mxu0 0.0
        %377 = vmatprep.subr.mxu0 0.0
        %378 = vmatpush1.msra.mxu0 0.0
        %379 = vmatprep.subr.mxu0 0.0
        %380 = vmatpush1.msra.mxu0 0.0
        %381 = vmatprep.subr.mxu0 0.0
        %382 = vmatpush1.msra.mxu0 0.0
        %383 = vmatprep.subr.mxu0 0.0
        %384 = vmatpush1.msra.mxu0 0.0
        %385 = vmatprep.mubr.f32.mxu0 0.0
        %386 = vmatmul.mubr.f32.gmra.mrb[0].mxu0 %v310
        %v387 = vpop.f32.mrb[0].mxu0
        %v388 = vadd.f32 0.0, %v387
        %v389 = vpop.f32.mrb[0].mxu0
        %390 = vmatprep.mubr.f32.mxu0 0.0
        %391 = vmatmul.mubr.f32.gmra.mrb[0].mxu0 %v313
        %v392 = vpop.f32.mrb[0].mxu0
        %v393 = vadd.f32 0.0, %v392
        %v394 = vpop.f32.mrb[0].mxu0
        %395 = vmatprep.mubr.f32.mxu0 0.0
        %396 = vmatmul.mubr.f32.gmra.mrb[0].mxu0 %v316
        %v397 = vpop.f32.mrb[0].mxu0
        %v398 = vadd.f32 0.0, %v397
        %v399 = vpop.f32.mrb[0].mxu0
        %400 = vmatprep.mubr.f32.mxu0 0.0
        %401 = vmatmul.mubr.f32.gmra.mrb[0].mxu0 %v319
        %v402 = vpop.f32.mrb[0].mxu0
        %v403 = vadd.f32 0.0, %v402
        %v404 = vpop.f32.mrb[0].mxu0
        %405 = vdwg.mxu0
        %406 = vst [vmem:[%s264] sm:$0xff] %v388
        %407 = vst [vmem:[%s264 + $0x8] sm:$0xff] %v393
        %408 = vst [vmem:[%s264 + $0x10] sm:$0xff] %v398
        %409 = vst [vmem:[%s264 + $0x18] sm:$0xff] %v403
        %s410 = sand.u32 %s123, 1
        %s411 = scalar_lea.sflag [#allocation4], %s410
        %s412 = sand.u32 %s123, 1
        %s413 = smul.addr %s412, 32
        %s414 = scalar_lea.vmem [#allocation8], %s413
        // Predicated region
        $region45: #{tpu_custom_call.1} parent=31 // pred_check
          %p415 = pneg %p133
        $region46: #{tpu_custom_call.1} parent=31 // pred_check_branch
          %417 = sbr.rel (%p415) target = $region48
        $region47: #{tpu_custom_call.1} parent=31 // pred_region
          %s418 = smul.u32 4, %s28
          %s420 = ssub.s32 512, 512
          %421 = vsyncadd %s411, %s420
          %s422 = smul.addr %s27, 4
          %s423 = sadd.s32 %s418, %s422
          %s424 = smul.addr %s423, 128
          %s425 = scalar_lea.hbm %s3, %s424
          %s426 = sshll.u32 %s414, 4
          %s427 = int_to_ptr.vmem [resolvable:$true] %s426
          %432 = dma.vmem_to_hbm [thread:$0]  %s427, 512, %s425, %s411, 128, 128, 8
        $region48: #{tpu_custom_call.1} parent=31 // pred_fallthru
          _
      $region32: #{tpu_custom_call.1} parent=5 // pred_fallthru
        _
      %p433 = scmp.le.s32.totalorder 2, %s18
      // Predicated region
      $region49: #{tpu_custom_call.1} parent=5 // pred_check
        %p434 = pneg %p433
      $region50: #{tpu_custom_call.1} parent=5 // pred_check_branch
        %436 = sbr.rel (%p434) target = $region52
      $region51: #{tpu_custom_call.1} parent=5 // pred_region
        %s437 = ssub.s32 %s18, 2
        // Predicated region
        $region53: #{tpu_custom_call.1} parent=51 // pred_check
          %p438 = pneg %p139
        $region54: #{tpu_custom_call.1} parent=51 // pred_check_branch
          %440 = sbr.rel (%p438) target = $region56
        $region55: #{tpu_custom_call.1} parent=51 // pred_region
          %s441 = sand.u32 %s124, 1
          %s442 = scalar_lea.sflag [#allocation4], %s441
          %s443 = sand.u32 %s124, 1
          %s444 = smul.addr %s443, 32
          %s445 = scalar_lea.vmem [#allocation8], %s444
          %446 = dma.done %s442, 512
        $region56: #{tpu_custom_call.1} parent=51 // pred_fallthru
          _
      $region52: #{tpu_custom_call.1} parent=5 // pred_fallthru
        _
    $region6: #{tpu_custom_call.1} parent=1 // loop_footer
      %s22 = sadd.s32 1, %s18
    $region7: #{tpu_custom_call.1} parent=1 // loop_footer_branch
      %17 = sbr.rel target = $region3
    $region8: #{tpu_custom_call.1} parent=1 // loop_exit
      _
    %447 = vsyncpa [#allocation3], 1
    %s448 = scalar_lea.sflag [#allocation3], 1
    %449 = vsyncpa %s448, 1
    %450 = vsyncpa [#allocation6], 1
    %s451 = scalar_lea.sflag [#allocation6], 1
    %452 = vsyncpa %s451, 1
    %453 = vsyncpa [#allocation4], 1
    %s454 = scalar_lea.sflag [#allocation4], 1
    %455 = vsyncpa %s454, 1

</llo_original>
